<compile_context>
chip_gen: v6e
topology: v6e:2x2x1
jax: 0.10.0
libtpu: 0.0.40
codegen_flags: <defaults>
</compile_context>

<pallas_src>
import math

import jax
import jax.numpy as jnp
from jax.experimental import pallas as pl
from jax.experimental.pallas import tpu as pltpu

_SEQ_TILE = 512  # seq-axis tile for long sequences (multiple of 8 and 128)


def _round_up(x, m):
    return ((x + m - 1) // m) * m


def data_embedding_kernel(ids_ref, emb_ref, pe_ref, out_ref):
    # ids_ref: (TILE_B, TILE_L) int32 -- token ids for this tile (streamed)
    # emb_ref: (c_in, D) f32          -- embedding table (VMEM resident, constant index)
    # pe_ref:  (TILE_L, D) f32        -- PE rows for this seq tile
    # out_ref: (TILE_B, TILE_L, D)    -- output tile (full-extent lane dim)
    tile_b, tile_l = ids_ref.shape
    c_in, d = emb_ref.shape

    ids = ids_ref[...]
    # Exact one-hot gather on the MXU (0/1 f32 rows -> result equals the table rows up to
    # normal matmul accumulation).  Out-of-range / padded ids give an all-zero row.
    # TODO(synk): for large vocabularies (c_in >> ~1-2k) replace with a real row gather
    # (scalar-prefetch ids + per-row DMA); the one-hot costs O(c_in) FLOPs/VMEM per row.
    one_hot = (
        jax.lax.broadcasted_iota(jnp.int32, (tile_b, tile_l, c_in), 2)
        == ids[:, :, None]
    ).astype(jnp.float32)
    vals = jnp.dot(
        one_hot.reshape(tile_b * tile_l, c_in),
        emb_ref[...],
        preferred_element_type=jnp.float32,
    ).reshape(tile_b, tile_l, d)

    # Positional encoding: plain broadcast add over the batch dim (VPU, no extra matmul).
    out_ref[...] = (vals + pe_ref[...][None, :, :]).astype(out_ref.dtype)


def positional_encoding(max_len, d_model):
    # Same construction as PositionalEmbedding.__init__ (d_model assumed even, as in PyTorch).
    position = jnp.arange(max_len, dtype=jnp.float32)[:, None]
    div_term = jnp.exp(
        jnp.arange(0, d_model, 2, dtype=jnp.float32) * -(math.log(10000.0) / d_model)
    )
    pe = jnp.zeros((max_len, d_model), dtype=jnp.float32)
    pe = pe.at[:, 0::2].set(jnp.sin(position * div_term))
    pe = pe.at[:, 1::2].set(jnp.cos(position * div_term))
    return pe


def prepare_data_embedding(emb_table, max_len=5000):
    """One-time (init-time) table prep, hoisted out of the per-call hot path.

    Returns (emb_table_f32, pe_table_f32).  The PE table is built with enough rows that the
    kernel's BlockSpec indexing never walks past it even when the sequence is tile-padded.
    """
    emb_table = jnp.asarray(emb_table, dtype=jnp.float32)
    d_model = emb_table.shape[1]
    max_len_pad = _round_up(max_len, _SEQ_TILE)
    pe_table = positional_encoding(max_len_pad, d_model)
    return emb_table, pe_table


def _choose_tiles(B, L):
    # Seq axis: one full-extent (8-aligned) tile for small L (no forced grid split on tiny
    # work); _SEQ_TILE tiles for long sequences (also gives >=2 steps/core on v7x).
    if L <= _SEQ_TILE:
        tile_l = _round_up(L, 8)
        l_pad = tile_l
    else:
        tile_l = _SEQ_TILE
        l_pad = _round_up(L, tile_l)
    # Batch axis: full batch when small, else 8-row (sublane-aligned) tiles.
    if B <= 8:
        tile_b, b_pad = B, B
    else:
        tile_b = 8
        b_pad = _round_up(B, tile_b)
    return tile_b, b_pad, tile_l, l_pad


def _vmem_capacity_bytes():
    try:
        return int(pltpu.get_tpu_info().vmem_capacity_bytes)
    except Exception:
        return 64 << 20  # conservative default: v7x per-TensorCore VMEM


def data_embedding(ids, emb_table, pe_table, out_dtype=jnp.float32):
    """ids: [B, L] int; emb_table: [c_in, D] f32; pe_table: [>= padded L, D] f32."""
    B, L = ids.shape
    c_in, D = emb_table.shape
    tile_b, b_pad, tile_l, l_pad = _choose_tiles(B, L)
    if pe_table.shape[0] < l_pad:
        raise ValueError("pe_table has fewer rows than the (padded) sequence length")

    ids = ids.astype(jnp.int32)
    if (b_pad, l_pad) != (B, L):
        ids = jnp.pad(ids, ((0, b_pad - B), (0, l_pad - L)))

    grid = (b_pad // tile_b, l_pad // tile_l)
    rows = tile_b * tile_l
    f32b = 4
    outb = jnp.dtype(out_dtype).itemsize

    # VMEM budget: what Pallas actually allocates (double buffers for streamed blocks, the
    # resident table counted twice as the worst case) + in-kernel intermediates + headroom,
    # clamped to this generation's capacity.
    needed = (
        2 * c_in * D * f32b                    # embedding table (worst case 2 buffers)
        + 2 * tile_l * D * f32b                # PE tile
        + 2 * rows * 4                         # ids tile
        + 2 * rows * D * outb                  # output tile
        + rows * _round_up(c_in, 128) * f32b   # one-hot intermediate
        + rows * D * f32b                      # matmul result before add/cast
    )
    vmem_limit = int(
        min(max(needed + (4 << 20), 16 << 20), int(_vmem_capacity_bytes() * 0.9))
    )

    out_shape = jax.ShapeDtypeStruct((b_pad, l_pad, D), out_dtype)

    def build(single_buffer_table):
        table_kwargs = (
            {"pipeline_mode": pl.Buffered(1)} if single_buffer_table else {}
        )
        return pl.pallas_call(
            data_embedding_kernel,
            out_shape=out_shape,
            grid_spec=pltpu.PrefetchScalarGridSpec(
                num_scalar_prefetch=0,
                grid=grid,
                in_specs=[
                    pl.BlockSpec((tile_b, tile_l), lambda b, l: (b, l)),  # token ids
                    pl.BlockSpec((c_in, D), lambda b, l: (0, 0), **table_kwargs),  # table
                    pl.BlockSpec((tile_l, D), lambda b, l: (l, 0)),       # PE rows
                ],
                out_specs=pl.BlockSpec((tile_b, tile_l, D), lambda b, l: (b, l, 0)),
            ),
            compiler_params=pltpu.CompilerParams(
                dimension_semantics=("parallel", "parallel"),
                vmem_limit_bytes=vmem_limit,
            ),
        )

    try:
        # Preferred: single-buffer the constant-index resident table (halves its VMEM
        # footprint -- matters for big c_in*D on v7x's 64 MiB per TensorCore).
        out = build(single_buffer_table=True)(ids, emb_table, pe_table)
    except Exception:
        # Portability fallback: some JAX versions do not accept Buffered(1) on a top-level
        # pallas_call BlockSpec.  The constant index_map still avoids any re-DMA.
        out = build(single_buffer_table=False)(ids, emb_table, pe_table)

    if (b_pad, l_pad) != (B, L):
        out = out[:B, :L]
    return out


if __name__ == "__main__":
    # Small, deterministic example consistent with DataEmbedding(c_in, d_model).
    B, L = 2, 8
    c_in, d_model = 16, 32

    key = jax.random.PRNGKey(0)
    k_emb, k_ids = jax.random.split(key)

    emb_raw = jax.random.normal(k_emb, (c_in, d_model), dtype=jnp.float32)
    ids = jax.random.randint(k_ids, (B, L), 0, c_in, dtype=jnp.int32)

    # One-time table prep (hoisted out of the hot path).  max_len=64 stands in for 5000.
    emb_table, pe_table = prepare_data_embedding(emb_raw, max_len=64)

    out = data_embedding(ids, emb_table, pe_table)
    out = jax.block_until_ready(out)

    # Pure-JAX reference of the PyTorch forward (dropout = identity in eval).
    ref = emb_table[ids] + pe_table[:L][None, :, :]

    assert out.shape == (B, L, d_model)
    assert jnp.allclose(out, ref, atol=1e-5, rtol=1e-5), "mismatch vs reference"
    print("KERNEL_OK")
</pallas_src>

<mosaic_0001>
module attributes {stable_mosaic.version = 11 : i64} {
  func.func @data_embedding_kernel(%arg0: i32, %arg1: i32, %arg2: memref<2x8xi32, #tpu.memory_space<vmem>>, %arg3: memref<16x32xf32, #tpu.memory_space<vmem>>, %arg4: memref<8x32xf32, #tpu.memory_space<vmem>>, %arg5: memref<2x8x32xf32, #tpu.memory_space<vmem>>) attributes {dimension_semantics = [#tpu.dimension_semantics<parallel>, #tpu.dimension_semantics<parallel>], iteration_bounds = array<i64: 1, 1>, scalar_prefetch = 0 : i64, scratch_operands = 0 : i64, tpu.core_type = #tpu.core_type<tc>, window_params = [{transform_indices = @transform_0, window_bounds = array<i64: 2, 8>}, {pipeline_mode = #tpu.pipeline_mode<synchronous>, transform_indices = @transform_1, window_bounds = array<i64: 16, 32>}, {transform_indices = @transform_2, window_bounds = array<i64: 8, 32>}, {transform_indices = @transform_3, window_bounds = array<i64: 2, 8, 32>}]} {
    %c0 = arith.constant 0 : index
    %c0_0 = arith.constant 0 : index
    %0 = vector.load %arg2[%c0, %c0_0] : memref<2x8xi32, #tpu.memory_space<vmem>>, vector<2x8xi32>
    %1 = tpu.iota {dimensions = array<i32: 2>} : vector<2x8x16xi32>
    %2 = vector.shape_cast %0 : vector<2x8xi32> to vector<2x8x1xi32>
    %3 = vector.broadcast %2 : vector<2x8x1xi32> to vector<2x8x16xi32>
    %4 = arith.cmpi eq, %1, %3 : vector<2x8x16xi32>
    %5 = arith.extui %4 : vector<2x8x16xi1> to vector<2x8x16xi32>
    %6 = arith.sitofp %5 : vector<2x8x16xi32> to vector<2x8x16xf32>
    %7 = vector.shape_cast %6 : vector<2x8x16xf32> to vector<16x16xf32>
    %c0_1 = arith.constant 0 : index
    %c0_2 = arith.constant 0 : index
    %8 = vector.load %arg3[%c0_1, %c0_2] : memref<16x32xf32, #tpu.memory_space<vmem>>, vector<16x32xf32>
    %cst = arith.constant dense<0.000000e+00> : vector<16x32xf32>
    %9 = tpu.matmul %7, %8, %cst {dimension_numbers = #tpu.dot_dimension_numbers<[1], [0], [0], [1], [0, 0, 1, 1], [], []>} : vector<16x16xf32>, vector<16x32xf32>, vector<16x32xf32> -> vector<16x32xf32>
    %10 = vector.shape_cast %9 : vector<16x32xf32> to vector<2x8x32xf32>
    %c0_3 = arith.constant 0 : index
    %c0_4 = arith.constant 0 : index
    %11 = vector.load %arg4[%c0_3, %c0_4] : memref<8x32xf32, #tpu.memory_space<vmem>>, vector<8x32xf32>
    %12 = vector.shape_cast %11 : vector<8x32xf32> to vector<1x8x32xf32>
    %13 = vector.broadcast %12 : vector<1x8x32xf32> to vector<2x8x32xf32>
    %14 = arith.addf %10, %13 : vector<2x8x32xf32>
    %c0_5 = arith.constant 0 : index
    %c0_6 = arith.constant 0 : index
    %c0_7 = arith.constant 0 : index
    %15 = vector.load %arg5[%c0_5, %c0_6, %c0_7] : memref<2x8x32xf32, #tpu.memory_space<vmem>>, vector<2x8x32xf32>
    tpu.vector_store %arg5[%c0_5, %c0_6, %c0_7], %14 {strides = array<i32>} : memref<2x8x32xf32, #tpu.memory_space<vmem>>, vector<2x8x32xf32>,
    return
  }
  func.func @transform_0(%arg0: i32, %arg1: i32) -> (i32, i32) {
    %c0_i32 = arith.constant 0 : i32
    return %arg0, %arg1 : i32, i32
  }
  func.func @transform_1(%arg0: i32, %arg1: i32) -> (i32, i32) {
    %c0_i32 = arith.constant 0 : i32
    %c0_i32_0 = arith.constant 0 : i32
    %c0_i32_1 = arith.constant 0 : i32
    return %c0_i32, %c0_i32_0 : i32, i32
  }
  func.func @transform_2(%arg0: i32, %arg1: i32) -> (i32, i32) {
    %c0_i32 = arith.constant 0 : i32
    %c0_i32_0 = arith.constant 0 : i32
    return %arg1, %c0_i32 : i32, i32
  }
  func.func @transform_3(%arg0: i32, %arg1: i32) -> (i32, i32, i32) {
    %c0_i32 = arith.constant 0 : i32
    %c0_i32_0 = arith.constant 0 : i32
    return %arg0, %arg1, %c0_i32 : i32, i32, i32
  }
}

module attributes {stable_mosaic.version = 11 : i64} {
  func.func @data_embedding_kernel(%arg0: i32, %arg1: i32, %arg2: memref<2x8xi32, #tpu.memory_space<vmem>>, %arg3: memref<16x32xf32, #tpu.memory_space<vmem>>, %arg4: memref<8x32xf32, #tpu.memory_space<vmem>>, %arg5: memref<2x8x32xf32, #tpu.memory_space<vmem>>) attributes {dimension_semantics = [#tpu.dimension_semantics<parallel>, #tpu.dimension_semantics<parallel>], iteration_bounds = array<i64: 1, 1>, scalar_prefetch = 0 : i64, scratch_operands = 0 : i64, tpu.core_type = #tpu.core_type<tc>, window_params = [{transform_indices = @transform_0, window_bounds = array<i64: 2, 8>}, {pipeline_mode = #tpu.pipeline_mode<synchronous>, transform_indices = @transform_1, window_bounds = array<i64: 16, 32>}, {transform_indices = @transform_2, window_bounds = array<i64: 8, 32>}, {transform_indices = @transform_3, window_bounds = array<i64: 2, 8, 32>}]} {
    %c0 = arith.constant 0 : index
    %c0_0 = arith.constant 0 : index
    %0 = vector.load %arg2[%c0, %c0_0] : memref<2x8xi32, #tpu.memory_space<vmem>>, vector<2x8xi32>
    %1 = tpu.iota {dimensions = array<i32: 2>} : vector<2x8x16xi32>
    %2 = vector.shape_cast %0 : vector<2x8xi32> to vector<2x8x1xi32>
    %3 = vector.broadcast %2 : vector<2x8x1xi32> to vector<2x8x16xi32>
    %4 = arith.cmpi eq, %1, %3 : vector<2x8x16xi32>
    %5 = arith.extui %4 : vector<2x8x16xi1> to vector<2x8x16xi32>
    %6 = arith.sitofp %5 : vector<2x8x16xi32> to vector<2x8x16xf32>
    %7 = vector.shape_cast %6 : vector<2x8x16xf32> to vector<16x16xf32>
    %c0_1 = arith.constant 0 : index
    %c0_2 = arith.constant 0 : index
    %8 = vector.load %arg3[%c0_1, %c0_2] : memref<16x32xf32, #tpu.memory_space<vmem>>, vector<16x32xf32>
    %cst = arith.constant dense<0.000000e+00> : vector<16x32xf32>
    %9 = tpu.matmul %7, %8, %cst {dimension_numbers = #tpu.dot_dimension_numbers<[1], [0], [0], [1], [0, 0, 1, 1], [], []>} : vector<16x16xf32>, vector<16x32xf32>, vector<16x32xf32> -> vector<16x32xf32>
    %10 = vector.shape_cast %9 : vector<16x32xf32> to vector<2x8x32xf32>
    %c0_3 = arith.constant 0 : index
    %c0_4 = arith.constant 0 : index
    %11 = vector.load %arg4[%c0_3, %c0_4] : memref<8x32xf32, #tpu.memory_space<vmem>>, vector<8x32xf32>
    %12 = vector.shape_cast %11 : vector<8x32xf32> to vector<1x8x32xf32>
    %13 = vector.broadcast %12 : vector<1x8x32xf32> to vector<2x8x32xf32>
    %14 = arith.addf %10, %13 : vector<2x8x32xf32>
    %c0_5 = arith.constant 0 : index
    %c0_6 = arith.constant 0 : index
    %c0_7 = arith.constant 0 : index
    %15 = vector.load %arg5[%c0_5, %c0_6, %c0_7] : memref<2x8x32xf32, #tpu.memory_space<vmem>>, vector<2x8x32xf32>
    tpu.vector_store %arg5[%c0_5, %c0_6, %c0_7], %14 {strides = array<i32>} : memref<2x8x32xf32, #tpu.memory_space<vmem>>, vector<2x8x32xf32>,
    return
  }
  func.func @transform_0(%arg0: i32, %arg1: i32) -> (i32, i32) {
    %c0_i32 = arith.constant 0 : i32
    return %arg0, %arg1 : i32, i32
  }
  func.func @transform_1(%arg0: i32, %arg1: i32) -> (i32, i32) {
    %c0_i32 = arith.constant 0 : i32
    %c0_i32_0 = arith.constant 0 : i32
    %c0_i32_1 = arith.constant 0 : i32
    return %c0_i32, %c0_i32_0 : i32, i32
  }
  func.func @transform_2(%arg0: i32, %arg1: i32) -> (i32, i32) {
    %c0_i32 = arith.constant 0 : i32
    %c0_i32_0 = arith.constant 0 : i32
    return %arg1, %c0_i32 : i32, i32
  }
  func.func @transform_3(%arg0: i32, %arg1: i32) -> (i32, i32, i32) {
    %c0_i32 = arith.constant 0 : i32
    %c0_i32_0 = arith.constant 0 : i32
    return %arg0, %arg1, %c0_i32 : i32, i32, i32
  }
}

</mosaic_0001>

<llo_original>
// kernel: tpu_custom_call.1
$region0: #{tpu_custom_call.1}
  #allocation0 [shape = 'u32[]', space=smem, size = 0x4, offset = 0x4, fixed_abs, tag = 'smem constant byte address 0x4 - core index']
  #allocation1 [shape = 'u32[144,128]{1,0:T(1,128)}', space=vmem, size = 0x12000, scoped, tag = 'internal scratch']
  %s0 = inlined_call_operand.vmem [shape: s32[2,8], index: 0, kind: input, shape index: {}]
  %s1 = inlined_call_operand.vmem [shape: f32[16,32], index: 1, kind: input, shape index: {}]
  %s2 = inlined_call_operand.vmem [shape: f32[512,32], index: 2, kind: input, shape index: {}]
  %s3 = inlined_call_operand.hbm [shape: f32[2,8,32], index: 3, kind: output, shape index: {}]
  %s4 = sld [smem:[#allocation0]]
  $region22: #{tpu_custom_call.1} parent=0
    _
  %s6 = ssub.s32 1, %s4
  %s7 = scalar_select 0, %s6, %s4
  $region1: #{tpu_custom_call.1} parent=0
    #allocation2 [shape = 'u8[8192]{0}', space=vmem, size = 0x2000, scoped, tag = 'output window, operand 0, single buffered']
    #allocation3 [shape = 's32[1]{0}', space=sflag, size = 0x4, scoped, tag = 'scoped memory for tpu_custom_call.1']
    %8 = vsyncpa [#allocation3], 0
    // Predicated region
    $region2: #{tpu_custom_call.1} parent=1 // pred_check
      _
    $region3: #{tpu_custom_call.1} parent=1 // pred_check_branch
      %10 = sbr.rel (0) target = $region5
    $region4: #{tpu_custom_call.1} parent=1 // pred_region
      _
    $region5: #{tpu_custom_call.1} parent=1 // pred_fallthru
      _
    // Predicated region
    $region6: #{tpu_custom_call.1} parent=1 // pred_check
      _
    $region7: #{tpu_custom_call.1} parent=1 // pred_check_branch
      %12 = sbr.rel (0) target = $region9
    $region8: #{tpu_custom_call.1} parent=1 // pred_region
      _
    $region9: #{tpu_custom_call.1} parent=1 // pred_fallthru
      _
    // Predicated region
    $region10: #{tpu_custom_call.1} parent=1 // pred_check
      _
    $region11: #{tpu_custom_call.1} parent=1 // pred_check_branch
      %14 = sbr.rel (0) target = $region13
    $region12: #{tpu_custom_call.1} parent=1 // pred_region
      _
    $region13: #{tpu_custom_call.1} parent=1 // pred_fallthru
      _
    %v15 = vld [vmem:[%s0] sm:$0x3]
    %v16 = vlaneseq
    %v17 = vand.u32 %v16, 127
    %v18 = vlaneseq
    %v19 = vshrl.u32 %v18, 7
    %v20 = vsub.s32 0, %v19
    %v21 = vrot.slane %v15, %v20
    %23 = vbcast.lane.b32.xlu0 %v21, 256
    %v24 = vpop.permute.xlu0 %23
    %v25 = vlaneseq
    %v26 = vshrl.u32 %v25, 7
    %v27 = vsub.s32 1, %v26
    %v28 = vrot.slane %v15, %v27
    %30 = vbcast.lane.b32.xlu0 %v28, 256
    %v31 = vpop.permute.xlu0 %30
    %vm32 = vcmp.eq.s32.totalorder %v17, %v24
    %vm33 = vcmp.eq.s32.totalorder %v17, %v31
    %v34 = vsel %vm32, 1, 0
    %v35 = vsel %vm33, 1, 0
    %v36 = vcvt.s32.f32 %v34
    %v37 = vcvt.s32.f32 %v35
    %v38 = vld [vmem:[%s1] sm:$0xff]
    %v39 = vld [vmem:[%s1 + $0x8] sm:$0xff]
    %vm40 = vcmask 130048
    %v42 = vsel %vm40, %v36, 0
    %v45 = vsel %vm40, %v37, 0
    %47 = vmatprep.subr.mxu0 0.0
    %48 = vmatpush1.msra.mxu0 0.0
    %49 = vmatprep.subr.mxu0 0.0
    %50 = vmatpush1.msra.mxu0 0.0
    %51 = vmatprep.subr.mxu0 0.0
    %52 = vmatpush1.msra.mxu0 0.0
    %53 = vmatprep.subr.mxu0 0.0
    %54 = vmatpush1.msra.mxu0 0.0
    %55 = vmatprep.subr.mxu0 0.0
    %56 = vmatpush1.msra.mxu0 0.0
    %57 = vmatprep.subr.mxu0 0.0
    %58 = vmatpush1.msra.mxu0 0.0
    %59 = vmatprep.subr.mxu0 0.0
    %60 = vmatpush1.msra.mxu0 0.0
    %61 = vmatprep.subr.mxu0 0.0
    %62 = vmatpush1.msra.mxu0 0.0
    %63 = vmatprep.subr.mxu0 0.0
    %64 = vmatpush1.msra.mxu0 0.0
    %65 = vmatprep.subr.mxu0 0.0
    %66 = vmatpush1.msra.mxu0 0.0
    %67 = vmatprep.subr.mxu0 0.0
    %68 = vmatpush1.msra.mxu0 0.0
    %69 = vmatprep.subr.mxu0 0.0
    %70 = vmatpush1.msra.mxu0 0.0
    %71 = vmatprep.subr.mxu0 0.0
    %72 = vmatpush1.msra.mxu0 0.0
    %73 = vmatprep.subr.mxu0 0.0
    %74 = vmatpush1.msra.mxu0 0.0
    %75 = vmatprep.subr.mxu0 0.0
    %76 = vmatpush1.msra.mxu0 %v39
    %77 = vmatprep.subr.mxu0 0.0
    %78 = vmatpush1.msra.mxu0 %v38
    %79 = vmatprep.subr.mxu0 0.0
    %80 = vmatpush2.msra.mxu0 0.0
    %81 = vmatprep.subr.mxu0 0.0
    %82 = vmatpush2.msra.mxu0 0.0
    %83 = vmatprep.subr.mxu0 0.0
    %84 = vmatpush2.msra.mxu0 0.0
    %85 = vmatprep.subr.mxu0 0.0
    %86 = vmatpush2.msra.mxu0 0.0
    %87 = vmatprep.subr.mxu0 0.0
    %88 = vmatpush2.msra.mxu0 0.0
    %89 = vmatprep.subr.mxu0 0.0
    %90 = vmatpush2.msra.mxu0 0.0
    %91 = vmatprep.subr.mxu0 0.0
    %92 = vmatpush2.msra.mxu0 0.0
    %93 = vmatprep.subr.mxu0 0.0
    %94 = vmatpush2.msra.mxu0 0.0
    %95 = vmatprep.subr.mxu0 0.0
    %96 = vmatpush2.msra.mxu0 0.0
    %97 = vmatprep.subr.mxu0 0.0
    %98 = vmatpush2.msra.mxu0 0.0
    %99 = vmatprep.subr.mxu0 0.0
    %100 = vmatpush2.msra.mxu0 0.0
    %101 = vmatprep.subr.mxu0 0.0
    %102 = vmatpush2.msra.mxu0 0.0
    %103 = vmatprep.subr.mxu0 0.0
    %104 = vmatpush2.msra.mxu0 0.0
    %105 = vmatprep.subr.mxu0 0.0
    %106 = vmatpush2.msra.mxu0 0.0
    %107 = vmatprep.subr.mxu0 0.0
    %108 = vmatpush2.msra.mxu0 0.0
    %109 = vmatprep.subr.mxu0 0.0
    %110 = vmatpush2.msra.mxu0 0.0
    %111 = vmatprep.mubr.f32.mxu0 0.0
    %112 = vmatmul.mubr.f32.gmra.mxu0 %v42
    %v113 = vpop.f32.mrf.mxu0
    %v114 = vadd.f32 0.0, %v113
    %v115 = vpop.f32.mrf.mxu0
    %116 = vmatprep.mubr.f32.mxu0 0.0
    %117 = vmatmul.mubr.f32.gmra.mxu0 %v45
    %v118 = vpop.f32.mrf.mxu0
    %v119 = vadd.f32 0.0, %v118
    %v120 = vpop.f32.mrf.mxu0
    %121 = vdwg.mxu0
    %v122 = vld [vmem:[%s2] sm:$0xff]
    %v123 = vadd.f32 %v114, %v122
    %v124 = vadd.f32 %v119, %v122
    %vm125 = vcmask 261120
    %126 = vst.msk [vmem:[#allocation2] sm:$0xff] %vm125, %v123
    %127 = vst.msk [vmem:[#allocation2 + $0x8] sm:$0xff] %vm125, %v124
    // Predicated region
    $region14: #{tpu_custom_call.1} parent=1 // pred_check
      _
    $region15: #{tpu_custom_call.1} parent=1 // pred_check_branch
      %129 = sbr.rel (0) target = $region17
    $region16: #{tpu_custom_call.1} parent=1 // pred_region
      %s131 = ssub.s32 256, 256
      %132 = vsyncadd [#allocation3], %s131
      %s133 = sshll.u32 [#allocation2], 4
      %s134 = int_to_ptr.vmem [resolvable:$true] %s133
      %139 = dma.vmem_to_hbm [thread:$0]  %s134, 256, %s3, [#allocation3], 128, 128, 8
    $region17: #{tpu_custom_call.1} parent=1 // pred_fallthru
      _
    // Predicated region
    $region18: #{tpu_custom_call.1} parent=1 // pred_check
      _
    $region19: #{tpu_custom_call.1} parent=1 // pred_check_branch
      %141 = sbr.rel (0) target = $region21
    $region20: #{tpu_custom_call.1} parent=1 // pred_region
      %142 = dma.done [#allocation3], 256
    $region21: #{tpu_custom_call.1} parent=1 // pred_fallthru
      _
    %143 = vsyncpa [#allocation3], 1

// kernel: tpu_custom_call.1
$region0: #{tpu_custom_call.1}
  #allocation0 [shape = 'u32[]', space=smem, size = 0x4, offset = 0x4, fixed_abs, tag = 'smem constant byte address 0x4 - core index']
  #allocation1 [shape = 'u32[144,128]{1,0:T(1,128)}', space=vmem, size = 0x12000, scoped, tag = 'internal scratch']
  %s0 = inlined_call_operand.vmem [shape: s32[2,8], index: 0, kind: input, shape index: {}]
  %s1 = inlined_call_operand.vmem [shape: f32[16,32], index: 1, kind: input, shape index: {}]
  %s2 = inlined_call_operand.vmem [shape: f32[512,32], index: 2, kind: input, shape index: {}]
  %s3 = inlined_call_operand.hbm [shape: f32[2,8,32], index: 3, kind: output, shape index: {}]
  %s4 = sld [smem:[#allocation0]]
  $region22: #{tpu_custom_call.1} parent=0
    _
  %s6 = ssub.s32 1, %s4
  %s7 = scalar_select 0, %s6, %s4
  $region1: #{tpu_custom_call.1} parent=0
    #allocation2 [shape = 'u8[8192]{0}', space=vmem, size = 0x2000, scoped, tag = 'output window, operand 0, single buffered']
    #allocation3 [shape = 's32[1]{0}', space=sflag, size = 0x4, scoped, tag = 'scoped memory for tpu_custom_call.1']
    %8 = vsyncpa [#allocation3], 0
    // Predicated region
    $region2: #{tpu_custom_call.1} parent=1 // pred_check
      _
    $region3: #{tpu_custom_call.1} parent=1 // pred_check_branch
      %10 = sbr.rel (0) target = $region5
    $region4: #{tpu_custom_call.1} parent=1 // pred_region
      _
    $region5: #{tpu_custom_call.1} parent=1 // pred_fallthru
      _
    // Predicated region
    $region6: #{tpu_custom_call.1} parent=1 // pred_check
      _
    $region7: #{tpu_custom_call.1} parent=1 // pred_check_branch
      %12 = sbr.rel (0) target = $region9
    $region8: #{tpu_custom_call.1} parent=1 // pred_region
      _
    $region9: #{tpu_custom_call.1} parent=1 // pred_fallthru
      _
    // Predicated region
    $region10: #{tpu_custom_call.1} parent=1 // pred_check
      _
    $region11: #{tpu_custom_call.1} parent=1 // pred_check_branch
      %14 = sbr.rel (0) target = $region13
    $region12: #{tpu_custom_call.1} parent=1 // pred_region
      _
    $region13: #{tpu_custom_call.1} parent=1 // pred_fallthru
      _
    %v15 = vld [vmem:[%s0] sm:$0x3]
    %v16 = vlaneseq
    %v17 = vand.u32 %v16, 127
    %v18 = vlaneseq
    %v19 = vshrl.u32 %v18, 7
    %v20 = vsub.s32 0, %v19
    %v21 = vrot.slane %v15, %v20
    %23 = vbcast.lane.b32.xlu0 %v21, 256
    %v24 = vpop.permute.xlu0 %23
    %v25 = vlaneseq
    %v26 = vshrl.u32 %v25, 7
    %v27 = vsub.s32 1, %v26
    %v28 = vrot.slane %v15, %v27
    %30 = vbcast.lane.b32.xlu0 %v28, 256
    %v31 = vpop.permute.xlu0 %30
    %vm32 = vcmp.eq.s32.totalorder %v17, %v24
    %vm33 = vcmp.eq.s32.totalorder %v17, %v31
    %v34 = vsel %vm32, 1, 0
    %v35 = vsel %vm33, 1, 0
    %v36 = vcvt.s32.f32 %v34
    %v37 = vcvt.s32.f32 %v35
    %v38 = vld [vmem:[%s1] sm:$0xff]
    %v39 = vld [vmem:[%s1 + $0x8] sm:$0xff]
    %vm40 = vcmask 130048
    %v42 = vsel %vm40, %v36, 0
    %v45 = vsel %vm40, %v37, 0
    %47 = vmatprep.subr.mxu0 0.0
    %48 = vmatpush1.msra.mxu0 0.0
    %49 = vmatprep.subr.mxu0 0.0
    %50 = vmatpush1.msra.mxu0 0.0
    %51 = vmatprep.subr.mxu0 0.0
    %52 = vmatpush1.msra.mxu0 0.0
    %53 = vmatprep.subr.mxu0 0.0
    %54 = vmatpush1.msra.mxu0 0.0
    %55 = vmatprep.subr.mxu0 0.0
    %56 = vmatpush1.msra.mxu0 0.0
    %57 = vmatprep.subr.mxu0 0.0
    %58 = vmatpush1.msra.mxu0 0.0
    %59 = vmatprep.subr.mxu0 0.0
    %60 = vmatpush1.msra.mxu0 0.0
    %61 = vmatprep.subr.mxu0 0.0
    %62 = vmatpush1.msra.mxu0 0.0
    %63 = vmatprep.subr.mxu0 0.0
    %64 = vmatpush1.msra.mxu0 0.0
    %65 = vmatprep.subr.mxu0 0.0
    %66 = vmatpush1.msra.mxu0 0.0
    %67 = vmatprep.subr.mxu0 0.0
    %68 = vmatpush1.msra.mxu0 0.0
    %69 = vmatprep.subr.mxu0 0.0
    %70 = vmatpush1.msra.mxu0 0.0
    %71 = vmatprep.subr.mxu0 0.0
    %72 = vmatpush1.msra.mxu0 0.0
    %73 = vmatprep.subr.mxu0 0.0
    %74 = vmatpush1.msra.mxu0 0.0
    %75 = vmatprep.subr.mxu0 0.0
    %76 = vmatpush1.msra.mxu0 %v39
    %77 = vmatprep.subr.mxu0 0.0
    %78 = vmatpush1.msra.mxu0 %v38
    %79 = vmatprep.subr.mxu0 0.0
    %80 = vmatpush2.msra.mxu0 0.0
    %81 = vmatprep.subr.mxu0 0.0
    %82 = vmatpush2.msra.mxu0 0.0
    %83 = vmatprep.subr.mxu0 0.0
    %84 = vmatpush2.msra.mxu0 0.0
    %85 = vmatprep.subr.mxu0 0.0
    %86 = vmatpush2.msra.mxu0 0.0
    %87 = vmatprep.subr.mxu0 0.0
    %88 = vmatpush2.msra.mxu0 0.0
    %89 = vmatprep.subr.mxu0 0.0
    %90 = vmatpush2.msra.mxu0 0.0
    %91 = vmatprep.subr.mxu0 0.0
    %92 = vmatpush2.msra.mxu0 0.0
    %93 = vmatprep.subr.mxu0 0.0
    %94 = vmatpush2.msra.mxu0 0.0
    %95 = vmatprep.subr.mxu0 0.0
    %96 = vmatpush2.msra.mxu0 0.0
    %97 = vmatprep.subr.mxu0 0.0
    %98 = vmatpush2.msra.mxu0 0.0
    %99 = vmatprep.subr.mxu0 0.0
    %100 = vmatpush2.msra.mxu0 0.0
    %101 = vmatprep.subr.mxu0 0.0
    %102 = vmatpush2.msra.mxu0 0.0
    %103 = vmatprep.subr.mxu0 0.0
    %104 = vmatpush2.msra.mxu0 0.0
    %105 = vmatprep.subr.mxu0 0.0
    %106 = vmatpush2.msra.mxu0 0.0
    %107 = vmatprep.subr.mxu0 0.0
    %108 = vmatpush2.msra.mxu0 0.0
    %109 = vmatprep.subr.mxu0 0.0
    %110 = vmatpush2.msra.mxu0 0.0
    %111 = vmatprep.mubr.f32.mxu0 0.0
    %112 = vmatmul.mubr.f32.gmra.mxu0 %v42
    %v113 = vpop.f32.mrf.mxu0
    %v114 = vadd.f32 0.0, %v113
    %v115 = vpop.f32.mrf.mxu0
    %116 = vmatprep.mubr.f32.mxu0 0.0
    %117 = vmatmul.mubr.f32.gmra.mxu0 %v45
    %v118 = vpop.f32.mrf.mxu0
    %v119 = vadd.f32 0.0, %v118
    %v120 = vpop.f32.mrf.mxu0
    %121 = vdwg.mxu0
    %v122 = vld [vmem:[%s2] sm:$0xff]
    %v123 = vadd.f32 %v114, %v122
    %v124 = vadd.f32 %v119, %v122
    %vm125 = vcmask 261120
    %126 = vst.msk [vmem:[#allocation2] sm:$0xff] %vm125, %v123
    %127 = vst.msk [vmem:[#allocation2 + $0x8] sm:$0xff] %vm125, %v124
    // Predicated region
    $region14: #{tpu_custom_call.1} parent=1 // pred_check
      _
    $region15: #{tpu_custom_call.1} parent=1 // pred_check_branch
      %129 = sbr.rel (0) target = $region17
    $region16: #{tpu_custom_call.1} parent=1 // pred_region
      %s131 = ssub.s32 256, 256
      %132 = vsyncadd [#allocation3], %s131
      %s133 = sshll.u32 [#allocation2], 4
      %s134 = int_to_ptr.vmem [resolvable:$true] %s133
      %139 = dma.vmem_to_hbm [thread:$0]  %s134, 256, %s3, [#allocation3], 128, 128, 8
    $region17: #{tpu_custom_call.1} parent=1 // pred_fallthru
      _
    // Predicated region
    $region18: #{tpu_custom_call.1} parent=1 // pred_check
      _
    $region19: #{tpu_custom_call.1} parent=1 // pred_check_branch
      %141 = sbr.rel (0) target = $region21
    $region20: #{tpu_custom_call.1} parent=1 // pred_region
      %142 = dma.done [#allocation3], 256
    $region21: #{tpu_custom_call.1} parent=1 // pred_fallthru
      _
    %143 = vsyncpa [#allocation3], 1

</llo_original>
